<compile_context>
chip_gen: v5e
topology: v5e:2x2
jax: 0.10.0
libtpu: 0.0.40
codegen_flags: <defaults>
</compile_context>

<pallas_src>
import functools

import jax
import jax.numpy as jnp
from jax.experimental import pallas as pl
from jax.experimental.pallas import tpu as pltpu


def _ccl_partials_kernel(y_ref, h_ref, c_ref, out_ref, *,
                         batch, num_classes, block_b):
    i = pl.program_id(0)

    h = h_ref[...]                                   # (tb, D)  input dtype
    y = y_ref[...]                                   # (tb, 1)  int32
    c = c_ref[...]                                   # (C, D)   input dtype
    tb = h.shape[0]

    h32 = h.astype(jnp.float32)

    # One-hot "gather" of each sample's own center row: (tb, C) @ (C, D) on
    # the MXU; no transpose, no per-row dynamic indexing.
    cls_ids = jax.lax.broadcasted_iota(jnp.int32, (tb, num_classes), 1)
    same = cls_ids == y                              # (tb, C) bool

    if batch % block_b != 0:
        # Mask rows past the true batch size (padded last tile).  Every
        # accumulated quantity below must see the masked h32 / same.
        row_ids = jax.lax.broadcasted_iota(jnp.int32, (tb, 1), 0) + i * block_b
        valid = row_ids < batch
        same = same & valid
        h32 = jnp.where(valid, h32, 0.0)

    onehot = same.astype(c.dtype)
    own_center = jnp.dot(onehot, c, preferred_element_type=jnp.float32)  # (tb, D)
    diff = h32 - own_center

    # Sublane-direction (cheap) reductions only; the single lane-direction
    # reduce happens once in the JAX epilogue.
    part = jnp.concatenate(
        [jnp.sum(diff * diff, axis=0, keepdims=True),   # intra partial
         jnp.sum(h32 * h32, axis=0, keepdims=True),     # ||h||^2 partial
         jnp.sum(h32, axis=0, keepdims=True)],          # sum_b h partial
        axis=0)                                          # (3, D)
    out_ref[...] = part[None].astype(out_ref.dtype)      # (1, 3, D)


def _vmem_capacity_bytes():
    try:
        return int(pltpu.get_tpu_info().vmem_capacity_bytes)
    except Exception:
        return 64 * 1024 * 1024   # conservative fallback (v7x per-TC VMEM)


def _pick_block_b(batch, dim, num_classes, itemsize, vmem_limit):
    """Largest sublane-aligned batch tile that fits the VMEM budget."""
    budget = int(vmem_limit * 0.75)                   # headroom for compiler temps
    fixed = (2 * num_classes * dim * itemsize         # centers (budgeted as double-
             + 2 * 3 * dim * 4                        #   buffered: conservative)
             + (1 << 20))                             # misc slack
    per_row = (2 * dim * itemsize                     # double-buffered hidden tile
               + 4 * dim * 4                          # f32 temps (h32/own/diff/sq)
               + num_classes * (itemsize + 4)         # one-hot + iota/compare
               + 2 * 4)                               # labels tile
    packing = max(8, 32 // itemsize)                  # sublane packing for dtype
    cap_rows = 512 if vmem_limit <= 32 * 1024 * 1024 else 1024
    tb = max(packing, (budget - fixed) // per_row)
    tb = min(batch, cap_rows, tb)
    if tb < batch:
        tb = max(packing, (tb // packing) * packing)
    return int(tb)


def contrastive_center_loss(y, hidden, centers, lambda_c=1.0):
    """y: int [B], hidden: [B, D], centers: [C, D] -> scalar float32 loss."""
    B, D = hidden.shape
    C, _ = centers.shape

    itemsize = jnp.dtype(hidden.dtype).itemsize
    vmem_cap = _vmem_capacity_bytes()
    vmem_limit = int(min(vmem_cap // 2, 64 * 1024 * 1024))
    tb = _pick_block_b(B, D, C, itemsize, vmem_limit)
    nb = pl.cdiv(B, tb)

    y2d = y.astype(jnp.int32).reshape(B, 1)

    kernel = functools.partial(
        _ccl_partials_kernel, batch=B, num_classes=C, block_b=tb)

    def build(single_buffer_centers):
        if single_buffer_centers:
            # Constant index map -> one resident copy is enough; halves the
            # centers VMEM footprint (matters for large C*D on v7x).
            c_spec = pl.BlockSpec((C, D), lambda i: (0, 0),
                                  pipeline_mode=pl.Buffered(1))
        else:
            c_spec = pl.BlockSpec((C, D), lambda i: (0, 0))
        return pl.pallas_call(
            kernel,
            out_shape=jax.ShapeDtypeStruct((nb, 3, D), jnp.float32),
            grid_spec=pltpu.PrefetchScalarGridSpec(
                num_scalar_prefetch=0,
                grid=(nb,),
                in_specs=[
                    pl.BlockSpec((tb, 1), lambda i: (i, 0)),   # labels tile
                    pl.BlockSpec((tb, D), lambda i: (i, 0)),   # hidden tile
                    c_spec,                                    # centers (resident)
                ],
                out_specs=pl.BlockSpec((1, 3, D), lambda i: (i, 0, 0)),
            ),
            compiler_params=pltpu.CompilerParams(
                dimension_semantics=("parallel",),
                vmem_limit_bytes=vmem_limit,
            ),
        )

    try:
        parts = build(True)(y2d, hidden, centers)
    except Exception:  # pragma: no cover - fall back if Buffered(1) unsupported
        parts = build(False)(y2d, hidden, centers)

    # Tiny combine + scalar epilogue (O(C*D + nb*D)) in plain JAX.
    sums = jnp.sum(parts, axis=0)                 # (3, D)
    intra = jnp.sum(sums[0])
    h_sq = jnp.sum(sums[1])
    h_sum = sums[2]                               # (D,)
    c32 = centers.astype(jnp.float32)
    c_sum = jnp.sum(c32, axis=0)                  # (D,)
    c_sq = jnp.sum(c32 * c32)
    total = C * h_sq + B * c_sq - 2.0 * jnp.dot(h_sum, c_sum)
    inter = total - intra
    loss = lambda_c / 2.0 / B * intra / (inter + 1e-6) / 0.1
    return loss.astype(jnp.float32)


def _reference(y, hidden, centers, lambda_c=1.0):
    # Pure-JAX reference mirroring the PyTorch forward exactly.
    b = hidden.shape[0]
    diff = hidden[:, None, :] - centers[None, :, :]
    dist = jnp.sum(diff * diff, axis=-1)                  # (B, C)
    intra = jnp.sum(jnp.take_along_axis(dist, y[:, None], axis=1))
    inter = jnp.sum(dist) - intra
    eps = 1e-6
    return lambda_c / 2.0 / b * intra / (inter + eps) / 0.1


if __name__ == "__main__":
    # Module parameters (deterministic init, mimicking nn.Parameter(torch.randn)).
    dim_hidden = 32
    num_classes = 4
    lambda_c = 1.0
    batch = 8

    key = jax.random.PRNGKey(0)
    k_cent, k_hid, k_y = jax.random.split(key, 3)

    centers = jax.random.normal(k_cent, (num_classes, dim_hidden), dtype=jnp.float32)
    hidden = jax.random.normal(k_hid, (batch, dim_hidden), dtype=jnp.float32)
    y = jax.random.randint(k_y, (batch,), 0, num_classes, dtype=jnp.int32)

    loss = contrastive_center_loss(y, hidden, centers, lambda_c)
    loss = jax.block_until_ready(loss)

    ref = _reference(y, hidden, centers, lambda_c)
    assert jnp.allclose(loss, ref, rtol=1e-4, atol=1e-5), (loss, ref)

    print("KERNEL_OK")
</pallas_src>

<mosaic_0001>
module attributes {stable_mosaic.version = 11 : i64} {
  func.func @_ccl_partials_kernel(%arg0: i32, %arg1: memref<8x1xi32, #tpu.memory_space<vmem>>, %arg2: memref<8x32xf32, #tpu.memory_space<vmem>>, %arg3: memref<4x32xf32, #tpu.memory_space<vmem>>, %arg4: memref<1x3x32xf32, #tpu.memory_space<vmem>>) attributes {dimension_semantics = [#tpu.dimension_semantics<parallel>], iteration_bounds = array<i64: 1>, scalar_prefetch = 0 : i64, scratch_operands = 0 : i64, tpu.core_type = #tpu.core_type<tc>, window_params = [{transform_indices = @transform_0, window_bounds = array<i64: 8, 1>}, {transform_indices = @transform_1, window_bounds = array<i64: 8, 32>}, {pipeline_mode = #tpu.pipeline_mode<synchronous>, transform_indices = @transform_2, window_bounds = array<i64: 4, 32>}, {transform_indices = @transform_3, window_bounds = array<i64: 1, 3, 32>}]} {
    %c0 = arith.constant 0 : index
    %c0_0 = arith.constant 0 : index
    %0 = vector.load %arg2[%c0, %c0_0] : memref<8x32xf32, #tpu.memory_space<vmem>>, vector<8x32xf32>
    %c0_1 = arith.constant 0 : index
    %c0_2 = arith.constant 0 : index
    %1 = vector.load %arg1[%c0_1, %c0_2] : memref<8x1xi32, #tpu.memory_space<vmem>>, vector<8x1xi32>
    %c0_3 = arith.constant 0 : index
    %c0_4 = arith.constant 0 : index
    %2 = vector.load %arg3[%c0_3, %c0_4] : memref<4x32xf32, #tpu.memory_space<vmem>>, vector<4x32xf32>
    %3 = tpu.iota {dimensions = array<i32: 1>} : vector<8x4xi32>
    %4 = vector.broadcast %1 : vector<8x1xi32> to vector<8x4xi32>
    %5 = arith.cmpi eq, %3, %4 : vector<8x4xi32>
    %6 = arith.extui %5 : vector<8x4xi1> to vector<8x4xi32>
    %7 = arith.sitofp %6 : vector<8x4xi32> to vector<8x4xf32>
    %cst = arith.constant dense<0.000000e+00> : vector<8x32xf32>
    %8 = tpu.matmul %7, %2, %cst {dimension_numbers = #tpu.dot_dimension_numbers<[1], [0], [0], [1], [0, 0, 1, 1], [], []>} : vector<8x4xf32>, vector<4x32xf32>, vector<8x32xf32> -> vector<8x32xf32>
    %9 = arith.subf %0, %8 : vector<8x32xf32>
    %10 = arith.mulf %9, %9 : vector<8x32xf32>
    %cst_5 = arith.constant dense<0.000000e+00> : vector<32xf32>
    %11 = vector.multi_reduction <add>, %10, %cst_5 [0] : vector<8x32xf32> to vector<32xf32>
    %12 = vector.shape_cast %11 : vector<32xf32> to vector<1x32xf32>
    %13 = arith.mulf %0, %0 : vector<8x32xf32>
    %cst_6 = arith.constant dense<0.000000e+00> : vector<32xf32>
    %14 = vector.multi_reduction <add>, %13, %cst_6 [0] : vector<8x32xf32> to vector<32xf32>
    %15 = vector.shape_cast %14 : vector<32xf32> to vector<1x32xf32>
    %cst_7 = arith.constant dense<0.000000e+00> : vector<32xf32>
    %16 = vector.multi_reduction <add>, %0, %cst_7 [0] : vector<8x32xf32> to vector<32xf32>
    %17 = vector.shape_cast %16 : vector<32xf32> to vector<1x32xf32>
    %18 = tpu.concatenate %12, %15, %17 in 0 : vector<1x32xf32>, vector<1x32xf32>, vector<1x32xf32> -> vector<3x32xf32>
    %19 = vector.shape_cast %18 : vector<3x32xf32> to vector<1x3x32xf32>
    %c0_8 = arith.constant 0 : index
    %c0_9 = arith.constant 0 : index
    %c0_10 = arith.constant 0 : index
    %20 = vector.load %arg4[%c0_8, %c0_9, %c0_10] : memref<1x3x32xf32, #tpu.memory_space<vmem>>, vector<1x3x32xf32>
    tpu.vector_store %arg4[%c0_8, %c0_9, %c0_10], %19 {strides = array<i32>} : memref<1x3x32xf32, #tpu.memory_space<vmem>>, vector<1x3x32xf32>,
    return
  }
  func.func @transform_0(%arg0: i32) -> (i32, i32) {
    %c0_i32 = arith.constant 0 : i32
    %c0_i32_0 = arith.constant 0 : i32
    return %arg0, %c0_i32 : i32, i32
  }
  func.func @transform_1(%arg0: i32) -> (i32, i32) {
    %c0_i32 = arith.constant 0 : i32
    %c0_i32_0 = arith.constant 0 : i32
    return %arg0, %c0_i32 : i32, i32
  }
  func.func @transform_2(%arg0: i32) -> (i32, i32) {
    %c0_i32 = arith.constant 0 : i32
    %c0_i32_0 = arith.constant 0 : i32
    %c0_i32_1 = arith.constant 0 : i32
    return %c0_i32, %c0_i32_0 : i32, i32
  }
  func.func @transform_3(%arg0: i32) -> (i32, i32, i32) {
    %c0_i32 = arith.constant 0 : i32
    %c0_i32_0 = arith.constant 0 : i32
    %c0_i32_1 = arith.constant 0 : i32
    return %arg0, %c0_i32, %c0_i32_0 : i32, i32, i32
  }
}

module attributes {stable_mosaic.version = 11 : i64} {
  func.func @_ccl_partials_kernel(%arg0: i32, %arg1: memref<8x1xi32, #tpu.memory_space<vmem>>, %arg2: memref<8x32xf32, #tpu.memory_space<vmem>>, %arg3: memref<4x32xf32, #tpu.memory_space<vmem>>, %arg4: memref<1x3x32xf32, #tpu.memory_space<vmem>>) attributes {dimension_semantics = [#tpu.dimension_semantics<parallel>], iteration_bounds = array<i64: 1>, scalar_prefetch = 0 : i64, scratch_operands = 0 : i64, tpu.core_type = #tpu.core_type<tc>, window_params = [{transform_indices = @transform_0, window_bounds = array<i64: 8, 1>}, {transform_indices = @transform_1, window_bounds = array<i64: 8, 32>}, {pipeline_mode = #tpu.pipeline_mode<synchronous>, transform_indices = @transform_2, window_bounds = array<i64: 4, 32>}, {transform_indices = @transform_3, window_bounds = array<i64: 1, 3, 32>}]} {
    %c0 = arith.constant 0 : index
    %c0_0 = arith.constant 0 : index
    %0 = vector.load %arg2[%c0, %c0_0] : memref<8x32xf32, #tpu.memory_space<vmem>>, vector<8x32xf32>
    %c0_1 = arith.constant 0 : index
    %c0_2 = arith.constant 0 : index
    %1 = vector.load %arg1[%c0_1, %c0_2] : memref<8x1xi32, #tpu.memory_space<vmem>>, vector<8x1xi32>
    %c0_3 = arith.constant 0 : index
    %c0_4 = arith.constant 0 : index
    %2 = vector.load %arg3[%c0_3, %c0_4] : memref<4x32xf32, #tpu.memory_space<vmem>>, vector<4x32xf32>
    %3 = tpu.iota {dimensions = array<i32: 1>} : vector<8x4xi32>
    %4 = vector.broadcast %1 : vector<8x1xi32> to vector<8x4xi32>
    %5 = arith.cmpi eq, %3, %4 : vector<8x4xi32>
    %6 = arith.extui %5 : vector<8x4xi1> to vector<8x4xi32>
    %7 = arith.sitofp %6 : vector<8x4xi32> to vector<8x4xf32>
    %cst = arith.constant dense<0.000000e+00> : vector<8x32xf32>
    %8 = tpu.matmul %7, %2, %cst {dimension_numbers = #tpu.dot_dimension_numbers<[1], [0], [0], [1], [0, 0, 1, 1], [], []>} : vector<8x4xf32>, vector<4x32xf32>, vector<8x32xf32> -> vector<8x32xf32>
    %9 = arith.subf %0, %8 : vector<8x32xf32>
    %10 = arith.mulf %9, %9 : vector<8x32xf32>
    %cst_5 = arith.constant dense<0.000000e+00> : vector<32xf32>
    %11 = vector.multi_reduction <add>, %10, %cst_5 [0] : vector<8x32xf32> to vector<32xf32>
    %12 = vector.shape_cast %11 : vector<32xf32> to vector<1x32xf32>
    %13 = arith.mulf %0, %0 : vector<8x32xf32>
    %cst_6 = arith.constant dense<0.000000e+00> : vector<32xf32>
    %14 = vector.multi_reduction <add>, %13, %cst_6 [0] : vector<8x32xf32> to vector<32xf32>
    %15 = vector.shape_cast %14 : vector<32xf32> to vector<1x32xf32>
    %cst_7 = arith.constant dense<0.000000e+00> : vector<32xf32>
    %16 = vector.multi_reduction <add>, %0, %cst_7 [0] : vector<8x32xf32> to vector<32xf32>
    %17 = vector.shape_cast %16 : vector<32xf32> to vector<1x32xf32>
    %18 = tpu.concatenate %12, %15, %17 in 0 : vector<1x32xf32>, vector<1x32xf32>, vector<1x32xf32> -> vector<3x32xf32>
    %19 = vector.shape_cast %18 : vector<3x32xf32> to vector<1x3x32xf32>
    %c0_8 = arith.constant 0 : index
    %c0_9 = arith.constant 0 : index
    %c0_10 = arith.constant 0 : index
    %20 = vector.load %arg4[%c0_8, %c0_9, %c0_10] : memref<1x3x32xf32, #tpu.memory_space<vmem>>, vector<1x3x32xf32>
    tpu.vector_store %arg4[%c0_8, %c0_9, %c0_10], %19 {strides = array<i32>} : memref<1x3x32xf32, #tpu.memory_space<vmem>>, vector<1x3x32xf32>,
    return
  }
  func.func @transform_0(%arg0: i32) -> (i32, i32) {
    %c0_i32 = arith.constant 0 : i32
    %c0_i32_0 = arith.constant 0 : i32
    return %arg0, %c0_i32 : i32, i32
  }
  func.func @transform_1(%arg0: i32) -> (i32, i32) {
    %c0_i32 = arith.constant 0 : i32
    %c0_i32_0 = arith.constant 0 : i32
    return %arg0, %c0_i32 : i32, i32
  }
  func.func @transform_2(%arg0: i32) -> (i32, i32) {
    %c0_i32 = arith.constant 0 : i32
    %c0_i32_0 = arith.constant 0 : i32
    %c0_i32_1 = arith.constant 0 : i32
    return %c0_i32, %c0_i32_0 : i32, i32
  }
  func.func @transform_3(%arg0: i32) -> (i32, i32, i32) {
    %c0_i32 = arith.constant 0 : i32
    %c0_i32_0 = arith.constant 0 : i32
    %c0_i32_1 = arith.constant 0 : i32
    return %arg0, %c0_i32, %c0_i32_0 : i32, i32, i32
  }
}

</mosaic_0001>

<llo_original>
// kernel: tpu_custom_call.1
$region0: #{tpu_custom_call.1}
  #allocation0 [shape = 'u32[]', space=smem, size = 0x4, offset = 0x4, fixed_abs, tag = 'smem constant byte address 0x4 - core index']
  #allocation1 [shape = 'u32[72,128]{1,0:T(1,128)}', space=vmem, size = 0x9000, scoped, tag = 'internal scratch']
  %s0 = inlined_call_operand.vmem [shape: s32[8,1], index: 0, kind: input, shape index: {}]
  %s1 = inlined_call_operand.vmem [shape: f32[8,32], index: 1, kind: input, shape index: {}]
  %s2 = inlined_call_operand.hbm [shape: f32[4,32], index: 2, kind: input, shape index: {}]
  %s3 = inlined_call_operand.vmem [shape: f32[1,3,32], index: 3, kind: output, shape index: {}]
  %s4 = sld [smem:[#allocation0]]
  $region26: #{tpu_custom_call.1} parent=0
    _
  %s6 = ssub.s32 1, %s4
  %s7 = scalar_select 0, %s6, %s4
  $region1: #{tpu_custom_call.1} parent=0
    #allocation2 [shape = 'u8[2048]{0}', space=vmem, size = 0x800, scoped, tag = 'input window, operand 2, single buffered']
    #allocation3 [shape = 's32[1]{0}', space=sflag, size = 0x4, scoped, tag = 'scoped memory for tpu_custom_call.1']
    %8 = vsyncpa [#allocation3], 0
    // Predicated region
    $region2: #{tpu_custom_call.1} parent=1 // pred_check
      _
    $region3: #{tpu_custom_call.1} parent=1 // pred_check_branch
      %10 = sbr.rel (0) target = $region5
    $region4: #{tpu_custom_call.1} parent=1 // pred_region
      _
    $region5: #{tpu_custom_call.1} parent=1 // pred_fallthru
      _
    // Predicated region
    $region6: #{tpu_custom_call.1} parent=1 // pred_check
      _
    $region7: #{tpu_custom_call.1} parent=1 // pred_check_branch
      %12 = sbr.rel (0) target = $region9
    $region8: #{tpu_custom_call.1} parent=1 // pred_region
      _
    $region9: #{tpu_custom_call.1} parent=1 // pred_fallthru
      _
    // Predicated region
    $region10: #{tpu_custom_call.1} parent=1 // pred_check
      _
    $region11: #{tpu_custom_call.1} parent=1 // pred_check_branch
      %14 = sbr.rel (0) target = $region13
    $region12: #{tpu_custom_call.1} parent=1 // pred_region
      %16 = vsyncadd [#allocation3], 0
      %s18 = sshll.u32 %s2, 4
      %s19 = int_to_ptr.hbm [resolvable:$true] %s18
      %s20 = sshll.u32 [#allocation2], 4
      %s21 = int_to_ptr.vmem [resolvable:$true] %s20
      %23 = dma.hbm_to_vmem [thread:$0]  %s19, 64, %s21, [#allocation3]
    $region13: #{tpu_custom_call.1} parent=1 // pred_fallthru
      _
    // Predicated region
    $region14: #{tpu_custom_call.1} parent=1 // pred_check
      _
    $region15: #{tpu_custom_call.1} parent=1 // pred_check_branch
      %25 = sbr.rel (0) target = $region17
    $region16: #{tpu_custom_call.1} parent=1 // pred_region
      %27 = dma.done [#allocation3], 64
    $region17: #{tpu_custom_call.1} parent=1 // pred_fallthru
      _
    %v28 = vld [vmem:[%s1] sm:$0xff]
    %v29 = vld [vmem:[%s0] sm:$0xff]
    %v30 = vld [vmem:[#allocation2] sm:$0xf]
    %v31 = vlaneseq
    %v32 = vand.u32 %v31, 127
    %33 = vset.pattern.permute.xlu0 0
    %34 = vperm.xlu0 %33, %v29
    %v35 = vpop.permute.xlu0 %34
    %vm36 = vcmp.eq.s32.totalorder %v32, %v35
    %v37 = vsel %vm36, 1, 0
    %v38 = vcvt.s32.f32 %v37
    %vm39 = vcmask 31744
    %v41 = vsel %vm39, %v38, 0
    %vm43 = vcmask 1043456
    %v45 = vsel %vm43, %v30, 0
    %47 = vmatpush.msra.mxu0 0.0
    %48 = vmatpush.msra.mxu0 0.0
    %49 = vmatpush.msra.mxu0 0.0
    %50 = vmatpush.msra.mxu0 0.0
    %51 = vmatpush.msra.mxu0 0.0
    %52 = vmatpush.msra.mxu0 0.0
    %53 = vmatpush.msra.mxu0 0.0
    %54 = vmatpush.msra.mxu0 0.0
    %55 = vmatpush.msra.mxu0 0.0
    %56 = vmatpush.msra.mxu0 0.0
    %57 = vmatpush.msra.mxu0 0.0
    %58 = vmatpush.msra.mxu0 0.0
    %59 = vmatpush.msra.mxu0 0.0
    %60 = vmatpush.msra.mxu0 0.0
    %61 = vmatpush.msra.mxu0 0.0
    %62 = vmatpush.msra.mxu0 %v45
    %63 = vmatmul.f32.gmra.mxu0 %v41
    %v64 = vpop.f32.mrf.mxu0
    %v65 = vadd.f32 0.0, %v64
    %66 = vdwg.mxu0
    %v67 = vsub.f32 %v28, %v65
    %v68 = vmul.f32 %v67, %v67
    %vm69 = vcmask 261120
    %v70 = vsel %vm69, %v68, 0.0
    %v71 = vrot.slane %v70, 4
    %v72 = vadd.f32 %v70, %v71
    %v73 = vrot.slane %v72, 2
    %v74 = vadd.f32 %v72, %v73
    %v75 = vrot.slane %v74, 1
    %v76 = vadd.f32 %v74, %v75
    %v77 = vmul.f32 %v28, %v28
    %v78 = vsel %vm69, %v77, 0.0
    %v79 = vrot.slane %v78, 4
    %v80 = vadd.f32 %v78, %v79
    %v81 = vrot.slane %v80, 2
    %v82 = vadd.f32 %v80, %v81
    %v83 = vrot.slane %v82, 1
    %v84 = vadd.f32 %v82, %v83
    %v85 = vsel %vm69, %v28, 0.0
    %v86 = vrot.slane %v85, 4
    %v87 = vadd.f32 %v85, %v86
    %v88 = vrot.slane %v87, 2
    %v89 = vadd.f32 %v87, %v88
    %v90 = vrot.slane %v89, 1
    %v91 = vadd.f32 %v89, %v90
    %vm92 = vcmask 1040384
    %v93 = vsel %vm92, %v76, %v84
    %vm94 = vcmask 1041408
    %v95 = vsel %vm94, %v93, %v91
    %vm96 = vcmask 256000
    %97 = vst.msk [vmem:[%s3] sm:$0x7] %vm96, %v95
    // Predicated region
    $region18: #{tpu_custom_call.1} parent=1 // pred_check
      _
    $region19: #{tpu_custom_call.1} parent=1 // pred_check_branch
      %99 = sbr.rel (0) target = $region21
    $region20: #{tpu_custom_call.1} parent=1 // pred_region
      _
    $region21: #{tpu_custom_call.1} parent=1 // pred_fallthru
      _
    // Predicated region
    $region22: #{tpu_custom_call.1} parent=1 // pred_check
      _
    $region23: #{tpu_custom_call.1} parent=1 // pred_check_branch
      %101 = sbr.rel (0) target = $region25
    $region24: #{tpu_custom_call.1} parent=1 // pred_region
      _
    $region25: #{tpu_custom_call.1} parent=1 // pred_fallthru
      _
    %102 = vsyncpa [#allocation3], 1

// kernel: tpu_custom_call.1
$region0: #{tpu_custom_call.1}
  #allocation0 [shape = 'u32[]', space=smem, size = 0x4, offset = 0x4, fixed_abs, tag = 'smem constant byte address 0x4 - core index']
  #allocation1 [shape = 'u32[72,128]{1,0:T(1,128)}', space=vmem, size = 0x9000, scoped, tag = 'internal scratch']
  %s0 = inlined_call_operand.vmem [shape: s32[8,1], index: 0, kind: input, shape index: {}]
  %s1 = inlined_call_operand.vmem [shape: f32[8,32], index: 1, kind: input, shape index: {}]
  %s2 = inlined_call_operand.hbm [shape: f32[4,32], index: 2, kind: input, shape index: {}]
  %s3 = inlined_call_operand.vmem [shape: f32[1,3,32], index: 3, kind: output, shape index: {}]
  %s4 = sld [smem:[#allocation0]]
  $region26: #{tpu_custom_call.1} parent=0
    _
  %s6 = ssub.s32 1, %s4
  %s7 = scalar_select 0, %s6, %s4
  $region1: #{tpu_custom_call.1} parent=0
    #allocation2 [shape = 'u8[2048]{0}', space=vmem, size = 0x800, scoped, tag = 'input window, operand 2, single buffered']
    #allocation3 [shape = 's32[1]{0}', space=sflag, size = 0x4, scoped, tag = 'scoped memory for tpu_custom_call.1']
    %8 = vsyncpa [#allocation3], 0
    // Predicated region
    $region2: #{tpu_custom_call.1} parent=1 // pred_check
      _
    $region3: #{tpu_custom_call.1} parent=1 // pred_check_branch
      %10 = sbr.rel (0) target = $region5
    $region4: #{tpu_custom_call.1} parent=1 // pred_region
      _
    $region5: #{tpu_custom_call.1} parent=1 // pred_fallthru
      _
    // Predicated region
    $region6: #{tpu_custom_call.1} parent=1 // pred_check
      _
    $region7: #{tpu_custom_call.1} parent=1 // pred_check_branch
      %12 = sbr.rel (0) target = $region9
    $region8: #{tpu_custom_call.1} parent=1 // pred_region
      _
    $region9: #{tpu_custom_call.1} parent=1 // pred_fallthru
      _
    // Predicated region
    $region10: #{tpu_custom_call.1} parent=1 // pred_check
      _
    $region11: #{tpu_custom_call.1} parent=1 // pred_check_branch
      %14 = sbr.rel (0) target = $region13
    $region12: #{tpu_custom_call.1} parent=1 // pred_region
      %16 = vsyncadd [#allocation3], 0
      %s18 = sshll.u32 %s2, 4
      %s19 = int_to_ptr.hbm [resolvable:$true] %s18
      %s20 = sshll.u32 [#allocation2], 4
      %s21 = int_to_ptr.vmem [resolvable:$true] %s20
      %23 = dma.hbm_to_vmem [thread:$0]  %s19, 64, %s21, [#allocation3]
    $region13: #{tpu_custom_call.1} parent=1 // pred_fallthru
      _
    // Predicated region
    $region14: #{tpu_custom_call.1} parent=1 // pred_check
      _
    $region15: #{tpu_custom_call.1} parent=1 // pred_check_branch
      %25 = sbr.rel (0) target = $region17
    $region16: #{tpu_custom_call.1} parent=1 // pred_region
      %27 = dma.done [#allocation3], 64
    $region17: #{tpu_custom_call.1} parent=1 // pred_fallthru
      _
    %v28 = vld [vmem:[%s1] sm:$0xff]
    %v29 = vld [vmem:[%s0] sm:$0xff]
    %v30 = vld [vmem:[#allocation2] sm:$0xf]
    %v31 = vlaneseq
    %v32 = vand.u32 %v31, 127
    %33 = vset.pattern.permute.xlu0 0
    %34 = vperm.xlu0 %33, %v29
    %v35 = vpop.permute.xlu0 %34
    %vm36 = vcmp.eq.s32.totalorder %v32, %v35
    %v37 = vsel %vm36, 1, 0
    %v38 = vcvt.s32.f32 %v37
    %vm39 = vcmask 31744
    %v41 = vsel %vm39, %v38, 0
    %vm43 = vcmask 1043456
    %v45 = vsel %vm43, %v30, 0
    %47 = vmatpush.msra.mxu0 0.0
    %48 = vmatpush.msra.mxu0 0.0
    %49 = vmatpush.msra.mxu0 0.0
    %50 = vmatpush.msra.mxu0 0.0
    %51 = vmatpush.msra.mxu0 0.0
    %52 = vmatpush.msra.mxu0 0.0
    %53 = vmatpush.msra.mxu0 0.0
    %54 = vmatpush.msra.mxu0 0.0
    %55 = vmatpush.msra.mxu0 0.0
    %56 = vmatpush.msra.mxu0 0.0
    %57 = vmatpush.msra.mxu0 0.0
    %58 = vmatpush.msra.mxu0 0.0
    %59 = vmatpush.msra.mxu0 0.0
    %60 = vmatpush.msra.mxu0 0.0
    %61 = vmatpush.msra.mxu0 0.0
    %62 = vmatpush.msra.mxu0 %v45
    %63 = vmatmul.f32.gmra.mxu0 %v41
    %v64 = vpop.f32.mrf.mxu0
    %v65 = vadd.f32 0.0, %v64
    %66 = vdwg.mxu0
    %v67 = vsub.f32 %v28, %v65
    %v68 = vmul.f32 %v67, %v67
    %vm69 = vcmask 261120
    %v70 = vsel %vm69, %v68, 0.0
    %v71 = vrot.slane %v70, 4
    %v72 = vadd.f32 %v70, %v71
    %v73 = vrot.slane %v72, 2
    %v74 = vadd.f32 %v72, %v73
    %v75 = vrot.slane %v74, 1
    %v76 = vadd.f32 %v74, %v75
    %v77 = vmul.f32 %v28, %v28
    %v78 = vsel %vm69, %v77, 0.0
    %v79 = vrot.slane %v78, 4
    %v80 = vadd.f32 %v78, %v79
    %v81 = vrot.slane %v80, 2
    %v82 = vadd.f32 %v80, %v81
    %v83 = vrot.slane %v82, 1
    %v84 = vadd.f32 %v82, %v83
    %v85 = vsel %vm69, %v28, 0.0
    %v86 = vrot.slane %v85, 4
    %v87 = vadd.f32 %v85, %v86
    %v88 = vrot.slane %v87, 2
    %v89 = vadd.f32 %v87, %v88
    %v90 = vrot.slane %v89, 1
    %v91 = vadd.f32 %v89, %v90
    %vm92 = vcmask 1040384
    %v93 = vsel %vm92, %v76, %v84
    %vm94 = vcmask 1041408
    %v95 = vsel %vm94, %v93, %v91
    %vm96 = vcmask 256000
    %97 = vst.msk [vmem:[%s3] sm:$0x7] %vm96, %v95
    // Predicated region
    $region18: #{tpu_custom_call.1} parent=1 // pred_check
      _
    $region19: #{tpu_custom_call.1} parent=1 // pred_check_branch
      %99 = sbr.rel (0) target = $region21
    $region20: #{tpu_custom_call.1} parent=1 // pred_region
      _
    $region21: #{tpu_custom_call.1} parent=1 // pred_fallthru
      _
    // Predicated region
    $region22: #{tpu_custom_call.1} parent=1 // pred_check
      _
    $region23: #{tpu_custom_call.1} parent=1 // pred_check_branch
      %101 = sbr.rel (0) target = $region25
    $region24: #{tpu_custom_call.1} parent=1 // pred_region
      _
    $region25: #{tpu_custom_call.1} parent=1 // pred_fallthru
      _
    %102 = vsyncpa [#allocation3], 1

</llo_original>
